<compile_context>
chip_gen: v7x
topology: tpu7x:2x2x1
jax: 0.10.0
libtpu: 0.0.40
codegen_flags: <defaults>
</compile_context>

<pallas_src>
import numpy as np
import jax
import jax.numpy as jnp
from jax.experimental import pallas as pl
from jax.experimental.pallas import tpu as pltpu

N_QUBITS = 8
NLANES = 128   # basis states 0..127 cover the returned probs[:8]; 128 lanes = unmasked stores
TB = 8         # batch tile: fills the 8 sublanes of an f32 vreg


# ----------------------------- Pallas kernel (hot path) -----------------------------

def _qlayer_kernel(cos_ref, diff_ref, out_ref):
    """cos_ref/diff_ref: (rows, 8) f32; out_ref: (rows, 128) f32 probabilities."""
    c = cos_ref[...]                                            # cos(x_i/2) per sample
    d = diff_ref[...]                                           # sin(x_i/2) - cos(x_i/2)
    m = jax.lax.broadcasted_iota(jnp.int32, (1, NLANES), 1)     # basis-state index per lane

    factors = []
    for i in range(N_QUBITS):
        # bit_i of P^{-1}(m): CX-chain inverse is adjacent-bit XOR (prefix-XOR undo)
        g = m if i == 0 else (m >> i) ^ (m >> (i - 1))
        bit = (g & 1).astype(jnp.float32)                       # (1, NLANES)
        # per-qubit factor: cos where bit==0, sin where bit==1 (one broadcast fma)
        factors.append(c[:, i:i + 1] + bit * d[:, i:i + 1])     # (rows, NLANES)

    # pairwise product tree: 8 -> 4 -> 2 -> 1 (3 dependent levels instead of 8)
    while len(factors) > 1:
        factors = [factors[j] * factors[j + 1] for j in range(0, len(factors), 2)]
    psi = factors[0]

    out_ref[...] = psi * psi                 # probabilities; RZ phases cancel in |.|^2


# ----------------------------- wrappers -----------------------------

def _cos_diff(angles):
    half = 0.5 * angles
    c = jnp.cos(half)
    return c, jnp.sin(half) - c


@jax.jit
def qiskit_quantum_layer(x, weights):
    """Single-sample forward (original contract): x.view(-1)[:8] -> (8,) probabilities."""
    # `weights` only parameterize diagonal RZ phases; |amplitude|^2 is phase-invariant,
    # so they cannot change the output (gradient w.r.t. weights is exactly zero).
    del weights
    if x.size < N_QUBITS:
        raise ValueError(f"need at least {N_QUBITS} elements in x, got {x.size}")
    angles = x.reshape(-1)[:N_QUBITS].astype(jnp.float32)
    c, d = _cos_diff(angles)

    probs = pl.pallas_call(
        _qlayer_kernel,
        out_shape=jax.ShapeDtypeStruct((1, NLANES), jnp.float32),
        in_specs=[pl.BlockSpec(memory_space=pltpu.MemorySpace.VMEM),
                  pl.BlockSpec(memory_space=pltpu.MemorySpace.VMEM)],
        out_specs=pl.BlockSpec(memory_space=pltpu.MemorySpace.VMEM),
        cost_estimate=pl.CostEstimate(
            flops=25 * NLANES, transcendentals=0,
            bytes_accessed=(2 * N_QUBITS + NLANES) * 4),
    )(c[None, :], d[None, :])

    return probs[0, :N_QUBITS]


@jax.jit
def qiskit_quantum_layer_batched(x, weights):
    """Batched forward: x (B, ...) -> (B, 8) probabilities from a single pallas_call."""
    del weights
    B = x.shape[0]
    flat = x.reshape(B, -1)
    if flat.shape[1] < N_QUBITS:
        raise ValueError(f"need at least {N_QUBITS} features per sample, got {flat.shape[1]}")
    angles = flat[:, :N_QUBITS].astype(jnp.float32)
    c, d = _cos_diff(angles)

    bpad = ((B + TB - 1) // TB) * TB
    if bpad != B:
        c = jnp.pad(c, ((0, bpad - B), (0, 0)))
        d = jnp.pad(d, ((0, bpad - B), (0, 0)))

    probs = pl.pallas_call(
        _qlayer_kernel,
        out_shape=jax.ShapeDtypeStruct((bpad, NLANES), jnp.float32),
        grid_spec=pltpu.PrefetchScalarGridSpec(
            num_scalar_prefetch=0,
            grid=(bpad // TB,),
            in_specs=[pl.BlockSpec((TB, N_QUBITS), lambda b: (b, 0)),
                      pl.BlockSpec((TB, N_QUBITS), lambda b: (b, 0))],
            out_specs=pl.BlockSpec((TB, NLANES), lambda b: (b, 0))),
        compiler_params=pltpu.CompilerParams(dimension_semantics=("parallel",)),
        cost_estimate=pl.CostEstimate(
            flops=25 * NLANES * bpad, transcendentals=0,
            bytes_accessed=(2 * N_QUBITS + NLANES) * 4 * bpad),
    )(c, d)

    return probs[:B, :N_QUBITS]


# TODO(synk): AerSimulator/transpile backend round-trip has no Pallas equivalent;
# replaced with the exact closed-form statevector probabilities (identical forward output).

if __name__ == "__main__":
    DIM = 2 ** N_QUBITS

    def ref_probs(angles8):
        """Pure numpy full-statevector reference (RY product + CX permutation)."""
        half = 0.5 * np.asarray(angles8, dtype=np.float64)
        cn, sn = np.cos(half), np.sin(half)
        bits = (np.arange(DIM)[:, None] >> np.arange(N_QUBITS)[None, :]) & 1
        amp = np.prod(np.where(bits == 1, sn[None, :], cn[None, :]), axis=1)
        g = np.arange(DIM)
        for i in range(N_QUBITS - 1):                 # forward CX-chain permutation P
            g = g ^ ((((g >> i) & 1)) << (i + 1))
        inv = np.empty(DIM, dtype=np.int64)
        inv[g] = np.arange(DIM)                       # P^{-1}
        return ((amp ** 2)[inv][:N_QUBITS]).astype(np.float32)

    key = jax.random.PRNGKey(0)
    kx, kw, kb = jax.random.split(key, 3)
    x = jax.random.normal(kx, (2, 4), dtype=jnp.float32)             # .view(-1) -> 8 angles
    weights = jax.random.normal(kw, (N_QUBITS,), dtype=jnp.float32)  # nn.Parameter(randn(8))
    xb = jax.random.normal(kb, (16, 2, 4), dtype=jnp.float32)        # batched samples

    out = jax.block_until_ready(qiskit_quantum_layer(x, weights))
    outb = jax.block_until_ready(qiskit_quantum_layer_batched(xb, weights))

    # --- single-sample check ---
    ref = ref_probs(np.asarray(x).reshape(-1)[:N_QUBITS])
    assert out.shape == (N_QUBITS,) and out.dtype == jnp.float32
    assert np.allclose(np.asarray(out), ref, atol=1e-6, rtol=1e-5)
    assert bool(np.all(np.asarray(out) >= -1e-6)) and float(np.sum(np.asarray(out))) <= 1.0 + 1e-3

    # --- batched check ---
    xb_np = np.asarray(xb).reshape(16, -1)[:, :N_QUBITS]
    refb = np.stack([ref_probs(xb_np[b]) for b in range(16)])
    assert outb.shape == (16, N_QUBITS) and outb.dtype == jnp.float32
    assert np.allclose(np.asarray(outb), refb, atol=1e-6, rtol=1e-5)

    print("KERNEL_OK")
</pallas_src>

<mosaic_0001>
module attributes {stable_mosaic.version = 11 : i64} {
  func.func @_qlayer_kernel(%arg0: memref<1x8xf32, #tpu.memory_space<vmem>>, %arg1: memref<1x8xf32, #tpu.memory_space<vmem>>, %arg2: memref<1x128xf32, #tpu.memory_space<vmem>>) attributes {dimension_semantics = [], scalar_prefetch = 0 : i64, scratch_operands = 0 : i64, tpu.core_type = #tpu.core_type<tc>} {
    %c0 = arith.constant 0 : index
    %c0_0 = arith.constant 0 : index
    %0 = vector.load %arg0[%c0, %c0_0] : memref<1x8xf32, #tpu.memory_space<vmem>>, vector<1x8xf32>
    %c0_1 = arith.constant 0 : index
    %c0_2 = arith.constant 0 : index
    %1 = vector.load %arg1[%c0_1, %c0_2] : memref<1x8xf32, #tpu.memory_space<vmem>>, vector<1x8xf32>
    %2 = tpu.iota {dimensions = array<i32: 1>} : vector<1x128xi32>
    %c1_i32 = arith.constant 1 : i32
    %3 = vector.broadcast %c1_i32 : i32 to vector<1x128xi32>
    %4 = arith.andi %2, %3 : vector<1x128xi32>
    %5 = arith.sitofp %4 : vector<1x128xi32> to vector<1x128xf32>
    %6 = vector.extract_strided_slice %0 {offsets = [0, 0], sizes = [1, 1], strides = [1, 1]} : vector<1x8xf32> to vector<1x1xf32>
    %7 = vector.extract_strided_slice %1 {offsets = [0, 0], sizes = [1, 1], strides = [1, 1]} : vector<1x8xf32> to vector<1x1xf32>
    %8 = vector.broadcast %7 : vector<1x1xf32> to vector<1x128xf32>
    %9 = arith.mulf %5, %8 : vector<1x128xf32>
    %10 = vector.broadcast %6 : vector<1x1xf32> to vector<1x128xf32>
    %11 = arith.addf %10, %9 : vector<1x128xf32>
    %c1_i32_3 = arith.constant 1 : i32
    %12 = vector.broadcast %c1_i32_3 : i32 to vector<1x128xi32>
    %13 = arith.shrsi %2, %12 : vector<1x128xi32>
    %c0_i32 = arith.constant 0 : i32
    %14 = vector.broadcast %c0_i32 : i32 to vector<1x128xi32>
    %15 = arith.shrsi %2, %14 : vector<1x128xi32>
    %16 = arith.xori %13, %15 : vector<1x128xi32>
    %c1_i32_4 = arith.constant 1 : i32
    %17 = vector.broadcast %c1_i32_4 : i32 to vector<1x128xi32>
    %18 = arith.andi %16, %17 : vector<1x128xi32>
    %19 = arith.sitofp %18 : vector<1x128xi32> to vector<1x128xf32>
    %20 = vector.extract_strided_slice %0 {offsets = [0, 1], sizes = [1, 1], strides = [1, 1]} : vector<1x8xf32> to vector<1x1xf32>
    %21 = vector.extract_strided_slice %1 {offsets = [0, 1], sizes = [1, 1], strides = [1, 1]} : vector<1x8xf32> to vector<1x1xf32>
    %22 = vector.broadcast %21 : vector<1x1xf32> to vector<1x128xf32>
    %23 = arith.mulf %19, %22 : vector<1x128xf32>
    %24 = vector.broadcast %20 : vector<1x1xf32> to vector<1x128xf32>
    %25 = arith.addf %24, %23 : vector<1x128xf32>
    %c2_i32 = arith.constant 2 : i32
    %26 = vector.broadcast %c2_i32 : i32 to vector<1x128xi32>
    %27 = arith.shrsi %2, %26 : vector<1x128xi32>
    %c1_i32_5 = arith.constant 1 : i32
    %28 = vector.broadcast %c1_i32_5 : i32 to vector<1x128xi32>
    %29 = arith.shrsi %2, %28 : vector<1x128xi32>
    %30 = arith.xori %27, %29 : vector<1x128xi32>
    %c1_i32_6 = arith.constant 1 : i32
    %31 = vector.broadcast %c1_i32_6 : i32 to vector<1x128xi32>
    %32 = arith.andi %30, %31 : vector<1x128xi32>
    %33 = arith.sitofp %32 : vector<1x128xi32> to vector<1x128xf32>
    %34 = vector.extract_strided_slice %0 {offsets = [0, 2], sizes = [1, 1], strides = [1, 1]} : vector<1x8xf32> to vector<1x1xf32>
    %35 = vector.extract_strided_slice %1 {offsets = [0, 2], sizes = [1, 1], strides = [1, 1]} : vector<1x8xf32> to vector<1x1xf32>
    %36 = vector.broadcast %35 : vector<1x1xf32> to vector<1x128xf32>
    %37 = arith.mulf %33, %36 : vector<1x128xf32>
    %38 = vector.broadcast %34 : vector<1x1xf32> to vector<1x128xf32>
    %39 = arith.addf %38, %37 : vector<1x128xf32>
    %c3_i32 = arith.constant 3 : i32
    %40 = vector.broadcast %c3_i32 : i32 to vector<1x128xi32>
    %41 = arith.shrsi %2, %40 : vector<1x128xi32>
    %c2_i32_7 = arith.constant 2 : i32
    %42 = vector.broadcast %c2_i32_7 : i32 to vector<1x128xi32>
    %43 = arith.shrsi %2, %42 : vector<1x128xi32>
    %44 = arith.xori %41, %43 : vector<1x128xi32>
    %c1_i32_8 = arith.constant 1 : i32
    %45 = vector.broadcast %c1_i32_8 : i32 to vector<1x128xi32>
    %46 = arith.andi %44, %45 : vector<1x128xi32>
    %47 = arith.sitofp %46 : vector<1x128xi32> to vector<1x128xf32>
    %48 = vector.extract_strided_slice %0 {offsets = [0, 3], sizes = [1, 1], strides = [1, 1]} : vector<1x8xf32> to vector<1x1xf32>
    %49 = vector.extract_strided_slice %1 {offsets = [0, 3], sizes = [1, 1], strides = [1, 1]} : vector<1x8xf32> to vector<1x1xf32>
    %50 = vector.broadcast %49 : vector<1x1xf32> to vector<1x128xf32>
    %51 = arith.mulf %47, %50 : vector<1x128xf32>
    %52 = vector.broadcast %48 : vector<1x1xf32> to vector<1x128xf32>
    %53 = arith.addf %52, %51 : vector<1x128xf32>
    %c4_i32 = arith.constant 4 : i32
    %54 = vector.broadcast %c4_i32 : i32 to vector<1x128xi32>
    %55 = arith.shrsi %2, %54 : vector<1x128xi32>
    %c3_i32_9 = arith.constant 3 : i32
    %56 = vector.broadcast %c3_i32_9 : i32 to vector<1x128xi32>
    %57 = arith.shrsi %2, %56 : vector<1x128xi32>
    %58 = arith.xori %55, %57 : vector<1x128xi32>
    %c1_i32_10 = arith.constant 1 : i32
    %59 = vector.broadcast %c1_i32_10 : i32 to vector<1x128xi32>
    %60 = arith.andi %58, %59 : vector<1x128xi32>
    %61 = arith.sitofp %60 : vector<1x128xi32> to vector<1x128xf32>
    %62 = vector.extract_strided_slice %0 {offsets = [0, 4], sizes = [1, 1], strides = [1, 1]} : vector<1x8xf32> to vector<1x1xf32>
    %63 = vector.extract_strided_slice %1 {offsets = [0, 4], sizes = [1, 1], strides = [1, 1]} : vector<1x8xf32> to vector<1x1xf32>
    %64 = vector.broadcast %63 : vector<1x1xf32> to vector<1x128xf32>
    %65 = arith.mulf %61, %64 : vector<1x128xf32>
    %66 = vector.broadcast %62 : vector<1x1xf32> to vector<1x128xf32>
    %67 = arith.addf %66, %65 : vector<1x128xf32>
    %c5_i32 = arith.constant 5 : i32
    %68 = vector.broadcast %c5_i32 : i32 to vector<1x128xi32>
    %69 = arith.shrsi %2, %68 : vector<1x128xi32>
    %c4_i32_11 = arith.constant 4 : i32
    %70 = vector.broadcast %c4_i32_11 : i32 to vector<1x128xi32>
    %71 = arith.shrsi %2, %70 : vector<1x128xi32>
    %72 = arith.xori %69, %71 : vector<1x128xi32>
    %c1_i32_12 = arith.constant 1 : i32
    %73 = vector.broadcast %c1_i32_12 : i32 to vector<1x128xi32>
    %74 = arith.andi %72, %73 : vector<1x128xi32>
    %75 = arith.sitofp %74 : vector<1x128xi32> to vector<1x128xf32>
    %76 = vector.extract_strided_slice %0 {offsets = [0, 5], sizes = [1, 1], strides = [1, 1]} : vector<1x8xf32> to vector<1x1xf32>
    %77 = vector.extract_strided_slice %1 {offsets = [0, 5], sizes = [1, 1], strides = [1, 1]} : vector<1x8xf32> to vector<1x1xf32>
    %78 = vector.broadcast %77 : vector<1x1xf32> to vector<1x128xf32>
    %79 = arith.mulf %75, %78 : vector<1x128xf32>
    %80 = vector.broadcast %76 : vector<1x1xf32> to vector<1x128xf32>
    %81 = arith.addf %80, %79 : vector<1x128xf32>
    %c6_i32 = arith.constant 6 : i32
    %82 = vector.broadcast %c6_i32 : i32 to vector<1x128xi32>
    %83 = arith.shrsi %2, %82 : vector<1x128xi32>
    %c5_i32_13 = arith.constant 5 : i32
    %84 = vector.broadcast %c5_i32_13 : i32 to vector<1x128xi32>
    %85 = arith.shrsi %2, %84 : vector<1x128xi32>
    %86 = arith.xori %83, %85 : vector<1x128xi32>
    %c1_i32_14 = arith.constant 1 : i32
    %87 = vector.broadcast %c1_i32_14 : i32 to vector<1x128xi32>
    %88 = arith.andi %86, %87 : vector<1x128xi32>
    %89 = arith.sitofp %88 : vector<1x128xi32> to vector<1x128xf32>
    %90 = vector.extract_strided_slice %0 {offsets = [0, 6], sizes = [1, 1], strides = [1, 1]} : vector<1x8xf32> to vector<1x1xf32>
    %91 = vector.extract_strided_slice %1 {offsets = [0, 6], sizes = [1, 1], strides = [1, 1]} : vector<1x8xf32> to vector<1x1xf32>
    %92 = vector.broadcast %91 : vector<1x1xf32> to vector<1x128xf32>
    %93 = arith.mulf %89, %92 : vector<1x128xf32>
    %94 = vector.broadcast %90 : vector<1x1xf32> to vector<1x128xf32>
    %95 = arith.addf %94, %93 : vector<1x128xf32>
    %c7_i32 = arith.constant 7 : i32
    %96 = vector.broadcast %c7_i32 : i32 to vector<1x128xi32>
    %97 = arith.shrsi %2, %96 : vector<1x128xi32>
    %c6_i32_15 = arith.constant 6 : i32
    %98 = vector.broadcast %c6_i32_15 : i32 to vector<1x128xi32>
    %99 = arith.shrsi %2, %98 : vector<1x128xi32>
    %100 = arith.xori %97, %99 : vector<1x128xi32>
    %c1_i32_16 = arith.constant 1 : i32
    %101 = vector.broadcast %c1_i32_16 : i32 to vector<1x128xi32>
    %102 = arith.andi %100, %101 : vector<1x128xi32>
    %103 = arith.sitofp %102 : vector<1x128xi32> to vector<1x128xf32>
    %104 = vector.extract_strided_slice %0 {offsets = [0, 7], sizes = [1, 1], strides = [1, 1]} : vector<1x8xf32> to vector<1x1xf32>
    %105 = vector.extract_strided_slice %1 {offsets = [0, 7], sizes = [1, 1], strides = [1, 1]} : vector<1x8xf32> to vector<1x1xf32>
    %106 = vector.broadcast %105 : vector<1x1xf32> to vector<1x128xf32>
    %107 = arith.mulf %103, %106 : vector<1x128xf32>
    %108 = vector.broadcast %104 : vector<1x1xf32> to vector<1x128xf32>
    %109 = arith.addf %108, %107 : vector<1x128xf32>
    %110 = arith.mulf %11, %25 : vector<1x128xf32>
    %111 = arith.mulf %39, %53 : vector<1x128xf32>
    %112 = arith.mulf %67, %81 : vector<1x128xf32>
    %113 = arith.mulf %95, %109 : vector<1x128xf32>
    %114 = arith.mulf %110, %111 : vector<1x128xf32>
    %115 = arith.mulf %112, %113 : vector<1x128xf32>
    %116 = arith.mulf %114, %115 : vector<1x128xf32>
    %117 = arith.mulf %116, %116 : vector<1x128xf32>
    %c0_17 = arith.constant 0 : index
    %c0_18 = arith.constant 0 : index
    %118 = vector.load %arg2[%c0_17, %c0_18] : memref<1x128xf32, #tpu.memory_space<vmem>>, vector<1x128xf32>
    tpu.vector_store %arg2[%c0_17, %c0_18], %117 {strides = array<i32>} : memref<1x128xf32, #tpu.memory_space<vmem>>, vector<1x128xf32>,
    return
  }
}

</mosaic_0001>

<llo_original>
// kernel: sub.7
$region0: #{sub.7}
  #allocation0 [shape = 's32[1]{0}', space=sflag, size = 0x4, scoped, tag = 'scoped memory for sub.7']
  %s0 = inlined_call_operand.vmem [shape: f32[1,8], index: 0, kind: input, shape index: {}]
  %s1 = inlined_call_operand.vmem [shape: f32[1,8], index: 1, kind: input, shape index: {}]
  %s2 = inlined_call_operand.vmem [shape: f32[1,8], index: 2, kind: output, shape index: {}]
  %v3 = vld [vmem:[%s0] sm:$0x1]
  %v4 = vld [vmem:[%s1] sm:$0x1]
  %5 = xla_tuple %v3, %v4
  %6 = xla_tuple %5
  %v7 = vsub.f32 %v3, %v4
  %8 = xla_tuple %v7
  %9 = vst [vmem:[%s2] sm:$0x1] %v7

// kernel: qiskit_quantum_layer.1
$region0: #{qiskit_quantum_layer.1}
  #allocation0 [shape = 'u32[]', space=smem, size = 0x4, offset = 0x4, fixed_abs, tag = 'smem constant byte address 0x4 - core index']
  #allocation1 [shape = 'u32[144,128]{1,0:T(1,128)}', space=vmem, size = 0x12000, scoped, tag = 'internal scratch']
  %s0 = inlined_call_operand.vmem [shape: f32[1,8], index: 0, kind: input, shape index: {}]
  %s1 = inlined_call_operand.vmem [shape: f32[1,8], index: 1, kind: input, shape index: {}]
  %s2 = inlined_call_operand.vmem [shape: f32[1,128], index: 2, kind: output, shape index: {}]
  %s3 = sld [smem:[#allocation0]]
  $region18: #{qiskit_quantum_layer.1} parent=0
    _
  %s5 = ssub.s32 1, %s3
  %s6 = scalar_select 0, %s5, %s3
  // Predicated region
  $region2: #{qiskit_quantum_layer.1} parent=0 // pred_check
    _
  $region3: #{qiskit_quantum_layer.1} parent=0 // pred_check_branch
    %8 = sbr.rel (0) target = $region5
  $region4: #{qiskit_quantum_layer.1} parent=0 // pred_region
    _
  $region5: #{qiskit_quantum_layer.1} parent=0 // pred_fallthru
    _
  // Predicated region
  $region6: #{qiskit_quantum_layer.1} parent=0 // pred_check
    _
  $region7: #{qiskit_quantum_layer.1} parent=0 // pred_check_branch
    %10 = sbr.rel (0) target = $region9
  $region8: #{qiskit_quantum_layer.1} parent=0 // pred_region
    _
  $region9: #{qiskit_quantum_layer.1} parent=0 // pred_fallthru
    _
  %v11 = vld [vmem:[%s0] sm:$0x1]
  %v12 = vld [vmem:[%s1] sm:$0x1]
  %v13 = vlaneseq
  %v14 = vand.u32 %v13, 127
  %v15 = vand.u32 %v14, 1
  %v16 = vcvt.s32.f32 %v15
  %18 = vset.pattern.permute.xlu0 0
  %19 = vperm.xlu0 %18, %v12
  %v20 = vpop.permute.xlu0 %19
  %v22 = vlaneseq
  %v23 = vshrl.u32 %v22, 7
  %v24 = vsub.s32 0, %v23
  %v25 = vrot.slane %v20, %v24
  %v26 = vmul.f32 %v16, %v25
  %28 = vset.pattern.permute.xlu0 0
  %29 = vperm.xlu0 %28, %v11
  %v30 = vpop.permute.xlu0 %29
  %v32 = vlaneseq
  %v33 = vshrl.u32 %v32, 7
  %v34 = vsub.s32 0, %v33
  %v35 = vrot.slane %v30, %v34
  %v36 = vadd.f32 %v35, %v26
  %v37 = vshra.s32 %v14, 1
  %v38 = vxor.u32 %v37, %v14
  %v39 = vand.u32 %v38, 1
  %v40 = vcvt.s32.f32 %v39
  %41 = vset.pattern.permute.xlu0 1
  %42 = vperm.xlu0 %41, %v12
  %v43 = vpop.permute.xlu0 %42
  %v45 = vlaneseq
  %v46 = vshrl.u32 %v45, 7
  %v47 = vsub.s32 0, %v46
  %v48 = vrot.slane %v43, %v47
  %v49 = vmul.f32 %v40, %v48
  %50 = vset.pattern.permute.xlu0 1
  %51 = vperm.xlu0 %50, %v11
  %v52 = vpop.permute.xlu0 %51
  %v54 = vlaneseq
  %v55 = vshrl.u32 %v54, 7
  %v56 = vsub.s32 0, %v55
  %v57 = vrot.slane %v52, %v56
  %v58 = vadd.f32 %v57, %v49
  %v59 = vshra.s32 %v14, 2
  %v60 = vxor.u32 %v59, %v37
  %v61 = vand.u32 %v60, 1
  %v62 = vcvt.s32.f32 %v61
  %63 = vset.pattern.permute.xlu0 2
  %64 = vperm.xlu0 %63, %v12
  %v65 = vpop.permute.xlu0 %64
  %v67 = vlaneseq
  %v68 = vshrl.u32 %v67, 7
  %v69 = vsub.s32 0, %v68
  %v70 = vrot.slane %v65, %v69
  %v71 = vmul.f32 %v62, %v70
  %72 = vset.pattern.permute.xlu0 2
  %73 = vperm.xlu0 %72, %v11
  %v74 = vpop.permute.xlu0 %73
  %v76 = vlaneseq
  %v77 = vshrl.u32 %v76, 7
  %v78 = vsub.s32 0, %v77
  %v79 = vrot.slane %v74, %v78
  %v80 = vadd.f32 %v79, %v71
  %v81 = vshra.s32 %v14, 3
  %v82 = vxor.u32 %v81, %v59
  %v83 = vand.u32 %v82, 1
  %v84 = vcvt.s32.f32 %v83
  %85 = vset.pattern.permute.xlu0 3
  %86 = vperm.xlu0 %85, %v12
  %v87 = vpop.permute.xlu0 %86
  %v89 = vlaneseq
  %v90 = vshrl.u32 %v89, 7
  %v91 = vsub.s32 0, %v90
  %v92 = vrot.slane %v87, %v91
  %v93 = vmul.f32 %v84, %v92
  %94 = vset.pattern.permute.xlu0 3
  %95 = vperm.xlu0 %94, %v11
  %v96 = vpop.permute.xlu0 %95
  %v98 = vlaneseq
  %v99 = vshrl.u32 %v98, 7
  %v100 = vsub.s32 0, %v99
  %v101 = vrot.slane %v96, %v100
  %v102 = vadd.f32 %v101, %v93
  %v103 = vshra.s32 %v14, 4
  %v104 = vxor.u32 %v103, %v81
  %v105 = vand.u32 %v104, 1
  %v106 = vcvt.s32.f32 %v105
  %107 = vset.pattern.permute.xlu0 4
  %108 = vperm.xlu0 %107, %v12
  %v109 = vpop.permute.xlu0 %108
  %v111 = vlaneseq
  %v112 = vshrl.u32 %v111, 7
  %v113 = vsub.s32 0, %v112
  %v114 = vrot.slane %v109, %v113
  %v115 = vmul.f32 %v106, %v114
  %116 = vset.pattern.permute.xlu0 4
  %117 = vperm.xlu0 %116, %v11
  %v118 = vpop.permute.xlu0 %117
  %v120 = vlaneseq
  %v121 = vshrl.u32 %v120, 7
  %v122 = vsub.s32 0, %v121
  %v123 = vrot.slane %v118, %v122
  %v124 = vadd.f32 %v123, %v115
  %v125 = vshra.s32 %v14, 5
  %v126 = vxor.u32 %v125, %v103
  %v127 = vand.u32 %v126, 1
  %v128 = vcvt.s32.f32 %v127
  %129 = vset.pattern.permute.xlu0 5
  %130 = vperm.xlu0 %129, %v12
  %v131 = vpop.permute.xlu0 %130
  %v133 = vlaneseq
  %v134 = vshrl.u32 %v133, 7
  %v135 = vsub.s32 0, %v134
  %v136 = vrot.slane %v131, %v135
  %v137 = vmul.f32 %v128, %v136
  %138 = vset.pattern.permute.xlu0 5
  %139 = vperm.xlu0 %138, %v11
  %v140 = vpop.permute.xlu0 %139
  %v142 = vlaneseq
  %v143 = vshrl.u32 %v142, 7
  %v144 = vsub.s32 0, %v143
  %v145 = vrot.slane %v140, %v144
  %v146 = vadd.f32 %v145, %v137
  %v147 = vshra.s32 %v14, 6
  %v148 = vxor.u32 %v147, %v125
  %v149 = vand.u32 %v148, 1
  %v150 = vcvt.s32.f32 %v149
  %151 = vset.pattern.permute.xlu0 6
  %152 = vperm.xlu0 %151, %v12
  %v153 = vpop.permute.xlu0 %152
  %v155 = vlaneseq
  %v156 = vshrl.u32 %v155, 7
  %v157 = vsub.s32 0, %v156
  %v158 = vrot.slane %v153, %v157
  %v159 = vmul.f32 %v150, %v158
  %160 = vset.pattern.permute.xlu0 6
  %161 = vperm.xlu0 %160, %v11
  %v162 = vpop.permute.xlu0 %161
  %v164 = vlaneseq
  %v165 = vshrl.u32 %v164, 7
  %v166 = vsub.s32 0, %v165
  %v167 = vrot.slane %v162, %v166
  %v168 = vadd.f32 %v167, %v159
  %v169 = vshra.s32 %v14, 7
  %v170 = vxor.u32 %v169, %v147
  %v171 = vand.u32 %v170, 1
  %v172 = vcvt.s32.f32 %v171
  %173 = vset.pattern.permute.xlu0 7
  %174 = vperm.xlu0 %173, %v12
  %v175 = vpop.permute.xlu0 %174
  %v177 = vlaneseq
  %v178 = vshrl.u32 %v177, 7
  %v179 = vsub.s32 0, %v178
  %v180 = vrot.slane %v175, %v179
  %v181 = vmul.f32 %v172, %v180
  %182 = vset.pattern.permute.xlu0 7
  %183 = vperm.xlu0 %182, %v11
  %v184 = vpop.permute.xlu0 %183
  %v186 = vlaneseq
  %v187 = vshrl.u32 %v186, 7
  %v188 = vsub.s32 0, %v187
  %v189 = vrot.slane %v184, %v188
  %v190 = vadd.f32 %v189, %v181
  %v191 = vmul.f32 %v36, %v58
  %v192 = vmul.f32 %v80, %v102
  %v193 = vmul.f32 %v124, %v146
  %v194 = vmul.f32 %v168, %v190
  %v195 = vmul.f32 %v191, %v192
  %v196 = vmul.f32 %v193, %v194
  %v197 = vmul.f32 %v195, %v196
  %v198 = vmul.f32 %v197, %v197
  %199 = vst [vmem:[%s2] sm:$0x1] %v198
  // Predicated region
  $region10: #{qiskit_quantum_layer.1} parent=0 // pred_check
    _
  $region11: #{qiskit_quantum_layer.1} parent=0 // pred_check_branch
    %201 = sbr.rel (0) target = $region13
  $region12: #{qiskit_quantum_layer.1} parent=0 // pred_region
    _
  $region13: #{qiskit_quantum_layer.1} parent=0 // pred_fallthru
    _
  // Predicated region
  $region14: #{qiskit_quantum_layer.1} parent=0 // pred_check
    _
  $region15: #{qiskit_quantum_layer.1} parent=0 // pred_check_branch
    %203 = sbr.rel (0) target = $region17
  $region16: #{qiskit_quantum_layer.1} parent=0 // pred_region
    _
  $region17: #{qiskit_quantum_layer.1} parent=0 // pred_fallthru
    _

</llo_original>
